<compile_context>
chip_gen: v7x
topology: tpu7x:2x2x1
jax: 0.10.0
libtpu: 0.0.40
codegen_flags: <defaults>
</compile_context>

<pallas_src>
import math
import functools

import jax
import jax.numpy as jnp
from jax import lax
from jax.experimental import pallas as pl
from jax.experimental.pallas import tpu as pltpu


_SQRT1_2 = 1.0 / math.sqrt(2.0)


def _round_up(x, m):
    return ((x + m - 1) // m) * m


def _gelu_exact(h):
    # PyTorch nn.GELU() default (approximate='none'), computed in f32.
    return 0.5 * h * (1.0 + lax.erf(h * _SQRT1_2))


def _pick_hidden_chunk(H, max_chunk=2048):
    """Largest chunk <= max_chunk that divides H (bounds the f32 GELU temp)."""
    if H <= max_chunk:
        return H
    for hc in (2048, 1536, 1024, 768, 512, 384, 256, 128):
        if hc <= max_chunk and H % hc == 0:
            return hc
    return H


def _vmem_budget_bytes():
    """Generation-aware VMEM budget (v5e/v6e: ~112 MiB, v7x: ~56 MiB)."""
    try:
        cap = int(pltpu.get_tpu_info().vmem_capacity_bytes)
    except Exception:
        cap = 64 << 20  # conservative (v7x-sized) fallback
    return max(min(cap - (8 << 20), (cap * 7) // 8), 32 << 20)


# ---------------------------------------------------------------------------
# Path A: weights fully VMEM-resident.  1-D grid over M blocks; each M block
# writes its output tile exactly once (no accumulator read-modify-write).
# ---------------------------------------------------------------------------
def ffn_resident_oneshot_kernel(x_ref, w1_ref, b1_ref, w2_ref, b2_ref, o_ref):
    h = jnp.dot(x_ref[...], w1_ref[...], preferred_element_type=jnp.float32)
    h = _gelu_exact(h + b1_ref[...])
    out = jnp.dot(h.astype(w2_ref.dtype), w2_ref[...],
                  preferred_element_type=jnp.float32)
    o_ref[...] = (out + b2_ref[...]).astype(o_ref.dtype)


def ffn_resident_chunked_kernel(x_ref, w1_ref, b1_ref, w2_ref, b2_ref, o_ref,
                                acc_ref, *, h_chunk, n_chunks):
    # Accumulator starts at the broadcast output bias: finalize is just a cast.
    acc_ref[...] = jnp.broadcast_to(b2_ref[...], acc_ref.shape).astype(jnp.float32)
    for ci in range(n_chunks):          # static chunks: zero-cost ref views
        lo, hi = ci * h_chunk, (ci + 1) * h_chunk
        h = jnp.dot(x_ref[...], w1_ref[:, lo:hi],
                    preferred_element_type=jnp.float32)
        h = _gelu_exact(h + b1_ref[:, lo:hi])
        acc_ref[...] += jnp.dot(h.astype(w2_ref.dtype), w2_ref[lo:hi, :],
                                preferred_element_type=jnp.float32)
    o_ref[...] = acc_ref[...].astype(o_ref.dtype)


# ---------------------------------------------------------------------------
# Path B: hidden dim tiled over the grid (weights streamed from HBM).
# Grid = (M_blocks, H_blocks); H (hidden) axis is the reduction axis.
# ---------------------------------------------------------------------------
def ffn_htiled_kernel(x_ref, w1_ref, b1_ref, w2_ref, b2_ref, o_ref, acc_ref):
    h_idx = pl.program_id(1)

    @pl.when(h_idx == 0)
    def _():
        acc_ref[...] = jnp.broadcast_to(b2_ref[...], acc_ref.shape).astype(jnp.float32)

    h = jnp.dot(x_ref[...], w1_ref[...], preferred_element_type=jnp.float32)
    h = _gelu_exact(h + b1_ref[...])
    acc_ref[...] += jnp.dot(h.astype(w2_ref.dtype), w2_ref[...],
                            preferred_element_type=jnp.float32)

    @pl.when(h_idx == pl.num_programs(1) - 1)
    def _():
        # Bias already folded into the accumulator init.  Dropout is identity
        # in eval/inference mode.
        o_ref[...] = acc_ref[...].astype(o_ref.dtype)


@functools.partial(jax.jit, static_argnames=("tile_m", "tile_h",
                                              "resident_h_chunk", "compute_dtype"))
def feed_forward(x, w1, b1, w2, b2, *, tile_m=None, tile_h=None,
                 resident_h_chunk=None, compute_dtype=jnp.bfloat16):
    """x: (B, T, C); w1: (C, 4C); b1: (4C,); w2: (4C, C); b2: (C,).

    compute_dtype: matmul-operand dtype (accumulation is always f32).
    tile_h: force the H-tiled streamed path with this hidden tile; None lets the
    kernel pick the weights-resident path whenever the weights fit this TPU
    generation's VMEM.  resident_h_chunk overrides the in-kernel hidden-dim
    chunking of the resident path (tuning / testing).
    """
    B, T, C = x.shape
    H = w1.shape[1]
    out_dtype = x.dtype
    M = B * T

    c_bytes = jnp.dtype(compute_dtype).itemsize
    o_bytes = jnp.dtype(out_dtype).itemsize
    pack = max(8, 32 // c_bytes)          # sublane packing: f32->8, bf16->16, fp8->32

    vmem_budget = _vmem_budget_bytes()

    def pick_tm(target):
        tm_ = min(_round_up(target, pack), _round_up(M, pack))
        # Keep >= 2 M blocks when possible: the "parallel" M axis is what
        # megacore shards across v7x's two TensorCores.
        if M > pack and -(-M // tm_) < 2:
            tm_ = max(pack, _round_up(-(-M // 2), pack))
        return tm_

    # ----- Path selection: weights resident whenever they fit the budget. -----
    weight_bytes = 2 * C * H * c_bytes + (H + C) * 4
    tm_res = pick_tm(tile_m if tile_m is not None else 256)
    hc = resident_h_chunk if resident_h_chunk is not None else _pick_hidden_chunk(H)
    assert H % hc == 0, "resident_h_chunk must divide 4*n_embd"
    n_chunks = H // hc
    resident_need = (weight_bytes
                     + 2 * tm_res * C * (c_bytes + o_bytes)      # x/out double-buffered
                     + (tm_res * C * 4 if n_chunks > 1 else 0)   # acc scratch
                     + 2 * tm_res * hc * 4)                      # f32 GELU temporaries
    use_resident = ((tile_h is None or tile_h >= H)
                    and resident_need <= vmem_budget)

    if use_resident:
        tm = tm_res
        th = H
        needed = resident_need
    else:
        tm = pick_tm(tile_m if tile_m is not None else 512)  # weight-reuse intensity
        if tile_h is not None and tile_h < H:
            th = tile_h
            assert H % th == 0 and th % 128 == 0, \
                "tile_h must divide 4*n_embd and be a multiple of 128"
        else:
            th = 128 if H % 128 == 0 else H
            for cand in (2048, 1024, 512, 256, 128):   # prefer >= 512 (MXU K dim)
                if H % cand:
                    continue
                need_c = (4 * C * cand * c_bytes + 2 * cand * 4 + C * 4
                          + 2 * tm * C * (c_bytes + o_bytes)
                          + tm * C * 4 + 2 * tm * cand * 4)
                if need_c <= vmem_budget:
                    th = cand
                    break
        needed = (4 * C * th * c_bytes + 2 * th * 4 + C * 4
                  + 2 * tm * C * (c_bytes + o_bytes)
                  + tm * C * 4 + 2 * tm * th * 4)
    n_h = H // th

    M_pad = _round_up(M, tm)
    n_m = M_pad // tm

    x2d = x.reshape(M, C)
    if M_pad != M:
        x2d = jnp.pad(x2d, ((0, M_pad - M), (0, 0)))
    x2d = x2d.astype(compute_dtype)
    w1c = w1.astype(compute_dtype)
    w2c = w2.astype(compute_dtype)
    b1_2d = b1.reshape(1, H).astype(jnp.float32)
    b2_2d = b2.reshape(1, C).astype(jnp.float32)

    vmem_limit = int(min(vmem_budget, max(needed * 3 // 2 + (4 << 20), 32 << 20)))

    w_reads = 1 if use_resident else n_m               # streamed path re-reads weights
    cost = pl.CostEstimate(
        flops=4 * M_pad * C * H,                       # two matmuls
        transcendentals=M_pad * H,                     # erf
        bytes_accessed=int(M_pad * C * (c_bytes + o_bytes)
                           + w_reads * 2 * C * H * c_bytes
                           + w_reads * H * 4 + C * 4),
    )

    if use_resident:
        if n_chunks == 1:
            kernel = ffn_resident_oneshot_kernel
            scratch = []
        else:
            kernel = functools.partial(ffn_resident_chunked_kernel,
                                       h_chunk=hc, n_chunks=n_chunks)
            scratch = [pltpu.VMEM((tm, C), jnp.float32)]
        one = pl.Buffered(1)                           # grid-invariant: single buffer
        grid_spec = pltpu.PrefetchScalarGridSpec(
            num_scalar_prefetch=0,
            grid=(n_m,),
            in_specs=[
                pl.BlockSpec((tm, C), lambda i: (i, 0)),                        # x
                pl.BlockSpec((C, H), lambda i: (0, 0), pipeline_mode=one),      # w1
                pl.BlockSpec((1, H), lambda i: (0, 0), pipeline_mode=one),      # b1
                pl.BlockSpec((H, C), lambda i: (0, 0), pipeline_mode=one),      # w2
                pl.BlockSpec((1, C), lambda i: (0, 0), pipeline_mode=one),      # b2
            ],
            out_specs=pl.BlockSpec((tm, C), lambda i: (i, 0)),
            scratch_shapes=scratch,
        )
        dim_sem = ("parallel",)
    else:
        kernel = ffn_htiled_kernel
        grid_spec = pltpu.PrefetchScalarGridSpec(
            num_scalar_prefetch=0,
            grid=(n_m, n_h),                           # reduction (H) axis last
            in_specs=[
                pl.BlockSpec((tm, C), lambda i, h: (i, 0)),                     # x
                pl.BlockSpec((C, th), lambda i, h: (0, h)),                     # w1
                pl.BlockSpec((1, th), lambda i, h: (0, h)),                     # b1
                pl.BlockSpec((th, C), lambda i, h: (h, 0)),                     # w2
                pl.BlockSpec((1, C), lambda i, h: (0, 0),
                             pipeline_mode=pl.Buffered(1)),                     # b2
            ],
            out_specs=pl.BlockSpec((tm, C), lambda i, h: (i, 0)),
            scratch_shapes=[pltpu.VMEM((tm, C), jnp.float32)],
        )
        dim_sem = ("parallel", "arbitrary")

    out2d = pl.pallas_call(
        kernel,
        out_shape=jax.ShapeDtypeStruct((M_pad, C), out_dtype),
        grid_spec=grid_spec,
        compiler_params=pltpu.CompilerParams(
            dimension_semantics=dim_sem,
            vmem_limit_bytes=vmem_limit,
        ),
        cost_estimate=cost,
    )(x2d, w1c, b1_2d, w2c, b2_2d)

    return out2d[:M].reshape(B, T, C)


def reference_feed_forward(x, w1, b1, w2, b2, *, compute_dtype=jnp.float32):
    h = jnp.dot(x.astype(compute_dtype), w1.astype(compute_dtype),
                preferred_element_type=jnp.float32) + b1
    h = _gelu_exact(h)
    out = jnp.dot(h.astype(compute_dtype), w2.astype(compute_dtype),
                  preferred_element_type=jnp.float32) + b2
    return out.astype(x.dtype)


if __name__ == "__main__":
    # Small config consistent with the module; C a multiple of 128 for lane-dense I/O.
    B, T, C = 2, 16, 128
    H = 4 * C

    key = jax.random.PRNGKey(0)
    kx, k1, k2, k3, k4 = jax.random.split(key, 5)

    x = jax.random.normal(kx, (B, T, C), dtype=jnp.float32)
    # Deterministic "Linear-like" init; layout (in_features, out_features).
    w1 = jax.random.normal(k1, (C, H), dtype=jnp.float32) * (1.0 / math.sqrt(C))
    b1 = jax.random.normal(k2, (H,), dtype=jnp.float32) * 0.01
    w2 = jax.random.normal(k3, (H, C), dtype=jnp.float32) * (1.0 / math.sqrt(H))
    b2 = jax.random.normal(k4, (C,), dtype=jnp.float32) * 0.01

    ref_f32 = reference_feed_forward(x, w1, b1, w2, b2, compute_dtype=jnp.float32)
    ref_bf16 = reference_feed_forward(x, w1, b1, w2, b2, compute_dtype=jnp.bfloat16)

    # TODO(synk): training-mode dropout (RNG mask via pltpu.prng_*) not implemented;
    # forward here is eval-mode (dropout = identity), matching module.eval().

    # Path A: auto (weights resident, one-shot hidden dim, no accumulator RMW).
    out_a = jax.block_until_ready(feed_forward(x, w1, b1, w2, b2))
    # Path B: H-tiled streamed kernel (f32 accumulator across the reduction axis).
    out_b = jax.block_until_ready(feed_forward(x, w1, b1, w2, b2, tile_h=256))
    # Path C: weights resident, hidden dim chunked inside the kernel.
    out_c = jax.block_until_ready(
        feed_forward(x, w1, b1, w2, b2, resident_h_chunk=256))

    for out in (out_a, out_b, out_c):
        assert out.shape == (B, T, C)
        assert jnp.allclose(out, ref_bf16, atol=1e-2, rtol=1e-2), "mismatch vs bf16 reference"
        assert jnp.allclose(out, ref_f32, atol=1e-1, rtol=1e-1), "mismatch vs f32 reference"

    print("KERNEL_OK")
</pallas_src>

<mosaic_0001>
module attributes {stable_mosaic.version = 11 : i64} {
  func.func @ffn_resident_oneshot_kernel(%arg0: i32, %arg1: memref<16x128xbf16, #tpu.memory_space<vmem>>, %arg2: memref<128x512xbf16, #tpu.memory_space<vmem>>, %arg3: memref<1x512xf32, #tpu.memory_space<vmem>>, %arg4: memref<512x128xbf16, #tpu.memory_space<vmem>>, %arg5: memref<1x128xf32, #tpu.memory_space<vmem>>, %arg6: memref<16x128xf32, #tpu.memory_space<vmem>>) attributes {dimension_semantics = [#tpu.dimension_semantics<parallel>], iteration_bounds = array<i64: 2>, scalar_prefetch = 0 : i64, scratch_operands = 0 : i64, tpu.core_type = #tpu.core_type<tc>, window_params = [{transform_indices = @transform_0, window_bounds = array<i64: 16, 128>}, {pipeline_mode = #tpu.pipeline_mode<synchronous>, transform_indices = @transform_1, window_bounds = array<i64: 128, 512>}, {pipeline_mode = #tpu.pipeline_mode<synchronous>, transform_indices = @transform_2, window_bounds = array<i64: 1, 512>}, {pipeline_mode = #tpu.pipeline_mode<synchronous>, transform_indices = @transform_3, window_bounds = array<i64: 512, 128>}, {pipeline_mode = #tpu.pipeline_mode<synchronous>, transform_indices = @transform_4, window_bounds = array<i64: 1, 128>}, {transform_indices = @transform_5, window_bounds = array<i64: 16, 128>}]} {
    %c0 = arith.constant 0 : index
    %c0_0 = arith.constant 0 : index
    %0 = vector.load %arg1[%c0, %c0_0] : memref<16x128xbf16, #tpu.memory_space<vmem>>, vector<16x128xbf16>
    %c0_1 = arith.constant 0 : index
    %c0_2 = arith.constant 0 : index
    %1 = vector.load %arg2[%c0_1, %c0_2] : memref<128x512xbf16, #tpu.memory_space<vmem>>, vector<128x512xbf16>
    %cst = arith.constant dense<0.000000e+00> : vector<16x512xf32>
    %2 = tpu.matmul %0, %1, %cst {dimension_numbers = #tpu.dot_dimension_numbers<[1], [0], [0], [1], [0, 0, 1, 1], [], []>} : vector<16x128xbf16>, vector<128x512xbf16>, vector<16x512xf32> -> vector<16x512xf32>
    %c0_3 = arith.constant 0 : index
    %c0_4 = arith.constant 0 : index
    %3 = vector.load %arg3[%c0_3, %c0_4] : memref<1x512xf32, #tpu.memory_space<vmem>>, vector<1x512xf32>
    %4 = vector.broadcast %3 : vector<1x512xf32> to vector<16x512xf32>
    %5 = arith.addf %2, %4 : vector<16x512xf32>
    %cst_5 = arith.constant 5.000000e-01 : f32
    %6 = vector.broadcast %cst_5 : f32 to vector<16x512xf32>
    %7 = arith.mulf %6, %5 : vector<16x512xf32>
    %cst_6 = arith.constant 0.707106769 : f32
    %8 = vector.broadcast %cst_6 : f32 to vector<16x512xf32>
    %9 = arith.mulf %5, %8 : vector<16x512xf32>
    %10 = math.erf %9 : vector<16x512xf32>
    %cst_7 = arith.constant 1.000000e+00 : f32
    %11 = vector.broadcast %cst_7 : f32 to vector<16x512xf32>
    %12 = arith.addf %11, %10 : vector<16x512xf32>
    %13 = arith.mulf %7, %12 : vector<16x512xf32>
    %14 = arith.truncf %13 : vector<16x512xf32> to vector<16x512xbf16>
    %c0_8 = arith.constant 0 : index
    %c0_9 = arith.constant 0 : index
    %15 = vector.load %arg4[%c0_8, %c0_9] : memref<512x128xbf16, #tpu.memory_space<vmem>>, vector<512x128xbf16>
    %cst_10 = arith.constant dense<0.000000e+00> : vector<16x128xf32>
    %16 = tpu.matmul %14, %15, %cst_10 {dimension_numbers = #tpu.dot_dimension_numbers<[1], [0], [0], [1], [0, 0, 1, 1], [], []>} : vector<16x512xbf16>, vector<512x128xbf16>, vector<16x128xf32> -> vector<16x128xf32>
    %c0_11 = arith.constant 0 : index
    %c0_12 = arith.constant 0 : index
    %17 = vector.load %arg5[%c0_11, %c0_12] : memref<1x128xf32, #tpu.memory_space<vmem>>, vector<1x128xf32>
    %18 = vector.broadcast %17 : vector<1x128xf32> to vector<16x128xf32>
    %19 = arith.addf %16, %18 : vector<16x128xf32>
    %c0_13 = arith.constant 0 : index
    %c0_14 = arith.constant 0 : index
    %20 = vector.load %arg6[%c0_13, %c0_14] : memref<16x128xf32, #tpu.memory_space<vmem>>, vector<16x128xf32>
    tpu.vector_store %arg6[%c0_13, %c0_14], %19 {strides = array<i32>} : memref<16x128xf32, #tpu.memory_space<vmem>>, vector<16x128xf32>,
    return
  }
  func.func @transform_0(%arg0: i32) -> (i32, i32) {
    %c0_i32 = arith.constant 0 : i32
    %c0_i32_0 = arith.constant 0 : i32
    return %arg0, %c0_i32 : i32, i32
  }
  func.func @transform_1(%arg0: i32) -> (i32, i32) {
    %c0_i32 = arith.constant 0 : i32
    %c0_i32_0 = arith.constant 0 : i32
    %c0_i32_1 = arith.constant 0 : i32
    return %c0_i32, %c0_i32_0 : i32, i32
  }
  func.func @transform_2(%arg0: i32) -> (i32, i32) {
    %c0_i32 = arith.constant 0 : i32
    %c0_i32_0 = arith.constant 0 : i32
    %c0_i32_1 = arith.constant 0 : i32
    return %c0_i32, %c0_i32_0 : i32, i32
  }
  func.func @transform_3(%arg0: i32) -> (i32, i32) {
    %c0_i32 = arith.constant 0 : i32
    %c0_i32_0 = arith.constant 0 : i32
    %c0_i32_1 = arith.constant 0 : i32
    return %c0_i32, %c0_i32_0 : i32, i32
  }
  func.func @transform_4(%arg0: i32) -> (i32, i32) {
    %c0_i32 = arith.constant 0 : i32
    %c0_i32_0 = arith.constant 0 : i32
    %c0_i32_1 = arith.constant 0 : i32
    return %c0_i32, %c0_i32_0 : i32, i32
  }
  func.func @transform_5(%arg0: i32) -> (i32, i32) {
    %c0_i32 = arith.constant 0 : i32
    %c0_i32_0 = arith.constant 0 : i32
    return %arg0, %c0_i32 : i32, i32
  }
}

</mosaic_0001>

<llo_original>
// kernel: feed_forward.1
$region0: #{feed_forward.1}
  #allocation0 [shape = 'u32[]', space=smem, size = 0x4, offset = 0x4, fixed_abs, tag = 'smem constant byte address 0x4 - core index']
  #allocation1 [shape = 'u32[144,128]{1,0:T(1,128)}', space=vmem, size = 0x12000, scoped, tag = 'internal scratch']
  %s0 = inlined_call_operand.vmem [shape: bf16[32,128], index: 0, kind: input, shape index: {}]
  %s1 = inlined_call_operand.vmem [shape: bf16[128,512], index: 1, kind: input, shape index: {}]
  %s2 = inlined_call_operand.vmem [shape: f32[1,512], index: 2, kind: input, shape index: {}]
  %s3 = inlined_call_operand.vmem [shape: bf16[512,128], index: 3, kind: input, shape index: {}]
  %s4 = inlined_call_operand.vmem [shape: f32[1,128], index: 4, kind: input, shape index: {}]
  %s5 = inlined_call_operand.hbm [shape: f32[32,128], index: 5, kind: output, shape index: {}]
  %s6 = sld [smem:[#allocation0]]
  $region53: #{feed_forward.1} parent=0
    _
  %s8 = ssub.s32 1, %s6
  %s9 = scalar_select 0, %s8, %s6
  $region1: #{feed_forward.1} parent=0
    #allocation2 [shape = 'u8[16384]{0}', space=vmem, size = 0x4000, scoped, tag = 'output window, operand 0']
    #allocation3 [shape = 's32[2]{0}', space=sflag, size = 0x8, scoped, tag = 'scoped memory for feed_forward.1']
    %10 = vsyncpa [#allocation3], 0
    %s11 = scalar_lea.sflag [#allocation3], 1
    %12 = vsyncpa %s11, 0
    loop: start=0, step=1, limit=4
    $region2: #{feed_forward.1} parent=1 // loop_pre_header
      _
    $region3: #{feed_forward.1} parent=1 // loop_header
      %s14 = sphi 0, %s18
      %p15 = scmp.ge.s32.totalorder %s14, 4
      %s24 = sphi 0, %s26
      %s27 = sphi 0, %s24
      %s28 = sphi 0, %s27
      %s44 = sphi 0, %s28
      %s48 = sphi 0, %s48
      %s50 = sphi 0, %s48
      %s51 = sphi 0, %s50
      %s65 = sphi 0, %s51
      %s69 = sphi 0, %s69
      %s71 = sphi 0, %s69
      %s72 = sphi 0, %s71
      %s86 = sphi 0, %s72
      %s90 = sphi 0, %s90
      %s92 = sphi 0, %s90
      %s93 = sphi 0, %s92
      %s107 = sphi 0, %s93
      %s111 = sphi 0, %s111
      %s113 = sphi 0, %s111
      %s114 = sphi 0, %s113
      %s128 = sphi 0, %s114
      %s134 = sphi 0, %s136
      %s137 = sphi 0, %s134
      %s138 = sphi 0, %s137
      %s154 = sphi 0, %s138
    $region4: #{feed_forward.1} parent=1 // loop_header_branch
      %17 = sbr.rel (%p15) target = $region8
    $region5: #{feed_forward.1} parent=1 // loop_body
      %s19 = ssub.s32 %s14, 1
      %s20 = ssub.s32 %s14, 2
      %s21 = sadd.s32 %s14, 1
      %s22 = ssub.s32 %s14, %s21
      %p23 = scmp.eq.s32.totalorder %s22, 0
      %s25 = sadd.s32 %s24, 1
      %s26 = scalar_select %p23, %s24, %s25
      %p29 = pneg %p23
      %p30 = scmp.eq.s32.totalorder %s14, 1
      %p31 = por %p29, %p30
      %p32 = scmp.ne.s32.totalorder %s24, %s27
      %p33 = scmp.eq.s32.totalorder %s14, 0
      %p34 = por %p32, %p33
      %p35 = scmp.ne.s32.totalorder %s24, %s27
      %p36 = scmp.eq.s32.totalorder %s19, 1
      %p37 = por %p35, %p36
      %p38 = scmp.ne.s32.totalorder %s27, %s28
      %p39 = scmp.eq.s32.totalorder %s19, 0
      %p40 = por %p38, %p39
      %p41 = scmp.ne.s32.totalorder %s27, %s28
      %p42 = scmp.eq.s32.totalorder %s20, 1
      %p43 = por %p41, %p42
      %p45 = scmp.ne.s32.totalorder %s28, %s44
      %p46 = scmp.eq.s32.totalorder %s20, 0
      %p47 = por %p45, %p46
      %s49 = sadd.s32 %s48, 1
      %p52 = scmp.eq.s32.totalorder %s14, 1
      %p53 = scmp.ne.s32.totalorder %s48, %s50
      %p54 = scmp.eq.s32.totalorder %s14, 0
      %p55 = por %p53, %p54
      %p56 = scmp.ne.s32.totalorder %s48, %s50
      %p57 = scmp.eq.s32.totalorder %s19, 1
      %p58 = por %p56, %p57
      %p59 = scmp.ne.s32.totalorder %s50, %s51
      %p60 = scmp.eq.s32.totalorder %s19, 0
      %p61 = por %p59, %p60
      %p62 = scmp.ne.s32.totalorder %s50, %s51
      %p63 = scmp.eq.s32.totalorder %s20, 1
      %p64 = por %p62, %p63
      %p66 = scmp.ne.s32.totalorder %s51, %s65
      %p67 = scmp.eq.s32.totalorder %s20, 0
      %p68 = por %p66, %p67
      %s70 = sadd.s32 %s69, 1
      %p73 = scmp.eq.s32.totalorder %s14, 1
      %p74 = scmp.ne.s32.totalorder %s69, %s71
      %p75 = scmp.eq.s32.totalorder %s14, 0
      %p76 = por %p74, %p75
      %p77 = scmp.ne.s32.totalorder %s69, %s71
      %p78 = scmp.eq.s32.totalorder %s19, 1
      %p79 = por %p77, %p78
      %p80 = scmp.ne.s32.totalorder %s71, %s72
      %p81 = scmp.eq.s32.totalorder %s19, 0
      %p82 = por %p80, %p81
      %p83 = scmp.ne.s32.totalorder %s71, %s72
      %p84 = scmp.eq.s32.totalorder %s20, 1
      %p85 = por %p83, %p84
      %p87 = scmp.ne.s32.totalorder %s72, %s86
      %p88 = scmp.eq.s32.totalorder %s20, 0
      %p89 = por %p87, %p88
      %s91 = sadd.s32 %s90, 1
      %p94 = scmp.eq.s32.totalorder %s14, 1
      %p95 = scmp.ne.s32.totalorder %s90, %s92
      %p96 = scmp.eq.s32.totalorder %s14, 0
      %p97 = por %p95, %p96
      %p98 = scmp.ne.s32.totalorder %s90, %s92
      %p99 = scmp.eq.s32.totalorder %s19, 1
      %p100 = por %p98, %p99
      %p101 = scmp.ne.s32.totalorder %s92, %s93
      %p102 = scmp.eq.s32.totalorder %s19, 0
      %p103 = por %p101, %p102
      %p104 = scmp.ne.s32.totalorder %s92, %s93
      %p105 = scmp.eq.s32.totalorder %s20, 1
      %p106 = por %p104, %p105
      %p108 = scmp.ne.s32.totalorder %s93, %s107
      %p109 = scmp.eq.s32.totalorder %s20, 0
      %p110 = por %p108, %p109
      %s112 = sadd.s32 %s111, 1
      %p115 = scmp.eq.s32.totalorder %s14, 1
      %p116 = scmp.ne.s32.totalorder %s111, %s113
      %p117 = scmp.eq.s32.totalorder %s14, 0
      %p118 = por %p116, %p117
      %p119 = scmp.ne.s32.totalorder %s111, %s113
      %p120 = scmp.eq.s32.totalorder %s19, 1
      %p121 = por %p119, %p120
      %p122 = scmp.ne.s32.totalorder %s113, %s114
      %p123 = scmp.eq.s32.totalorder %s19, 0
      %p124 = por %p122, %p123
      %p125 = scmp.ne.s32.totalorder %s113, %s114
      %p126 = scmp.eq.s32.totalorder %s20, 1
      %p127 = por %p125, %p126
      %p129 = scmp.ne.s32.totalorder %s114, %s128
      %p130 = scmp.eq.s32.totalorder %s20, 0
      %p131 = por %p129, %p130
      %s132 = ssub.s32 %s14, %s21
      %p133 = scmp.eq.s32.totalorder %s132, 0
      %s135 = sadd.s32 %s134, 1
      %s136 = scalar_select %p133, %s134, %s135
      %p139 = pneg %p133
      %p140 = scmp.eq.s32.totalorder %s14, 1
      %p141 = por %p139, %p140
      %p142 = scmp.ne.s32.totalorder %s134, %s137
      %p143 = scmp.eq.s32.totalorder %s14, 0
      %p144 = por %p142, %p143
      %p145 = scmp.ne.s32.totalorder %s134, %s137
      %p146 = scmp.eq.s32.totalorder %s19, 1
      %p147 = por %p145, %p146
      %p148 = scmp.ne.s32.totalorder %s137, %s138
      %p149 = scmp.eq.s32.totalorder %s19, 0
      %p150 = por %p148, %p149
      %p151 = scmp.ne.s32.totalorder %s137, %s138
      %p152 = scmp.eq.s32.totalorder %s20, 1
      %p153 = por %p151, %p152
      %p155 = scmp.ne.s32.totalorder %s138, %s154
      %p156 = scmp.eq.s32.totalorder %s20, 0
      %p157 = por %p155, %p156
      %p158 = scmp.le.s32.totalorder 1, %s14
      %p159 = scmp.lt.s32.totalorder %s14, 3
      %p160 = pnand %p158, %p159
      %p161 = pneg %p160
      // Predicated region
      $region9: #{feed_forward.1} parent=5 // pred_check
        _
      $region10: #{feed_forward.1} parent=5 // pred_check_branch
        %163 = sbr.rel (%p160) target = $region12
      $region11: #{feed_forward.1} parent=5 // pred_region
        %s164 = ssub.s32 %s14, 1
        // Predicated region
        $region13: #{feed_forward.1} parent=11 // pred_check
          %p165 = pneg %p61
        $region14: #{feed_forward.1} parent=11 // pred_check_branch
          %167 = sbr.rel (%p165) target = $region16
        $region15: #{feed_forward.1} parent=11 // pred_region
          _
        $region16: #{feed_forward.1} parent=11 // pred_fallthru
          _
        // Predicated region
        $region17: #{feed_forward.1} parent=11 // pred_check
          %p168 = pneg %p82
        $region18: #{feed_forward.1} parent=11 // pred_check_branch
          %170 = sbr.rel (%p168) target = $region20
        $region19: #{feed_forward.1} parent=11 // pred_region
          _
        $region20: #{feed_forward.1} parent=11 // pred_fallthru
          _
        // Predicated region
        $region21: #{feed_forward.1} parent=11 // pred_check
          %p171 = pneg %p103
        $region22: #{feed_forward.1} parent=11 // pred_check_branch
          %173 = sbr.rel (%p171) target = $region24
        $region23: #{feed_forward.1} parent=11 // pred_region
          _
        $region24: #{feed_forward.1} parent=11 // pred_fallthru
          _
        // Predicated region
        $region25: #{feed_forward.1} parent=11 // pred_check
          %p174 = pneg %p124
        $region26: #{feed_forward.1} parent=11 // pred_check_branch
          %176 = sbr.rel (%p174) target = $region28
        $region27: #{feed_forward.1} parent=11 // pred_region
          _
        $region28: #{feed_forward.1} parent=11 // pred_fallthru
          _
      $region12: #{feed_forward.1} parent=5 // pred_fallthru
        _
      %p177 = scmp.lt.s32.totalorder %s14, 2
      // Predicated region
      $region29: #{feed_forward.1} parent=5 // pred_check
        %p178 = pneg %p177
      $region30: #{feed_forward.1} parent=5 // pred_check_branch
        %180 = sbr.rel (%p178) target = $region32
      $region31: #{feed_forward.1} parent=5 // pred_region
        // Predicated region
        $region33: #{feed_forward.1} parent=31 // pred_check
          %p181 = pneg %p34
        $region34: #{feed_forward.1} parent=31 // pred_check_branch
          %183 = sbr.rel (%p181) target = $region36
        $region35: #{feed_forward.1} parent=31 // pred_region
          %s184 = smul.u32 2, %s14
          %p185 = scmp.lt.s32.totalorder %s184, 3
          %s186 = scalar_select %p185, %s184, 3
          %s187 = smul.addr %s186, 4
          %s188 = scalar_lea.vmem %s0, %s187
          %s189 = smul.u32 2, %s14
        $region36: #{feed_forward.1} parent=31 // pred_fallthru
          _
      $region32: #{feed_forward.1} parent=5 // pred_fallthru
        _
      %p190 = scmp.le.s32.totalorder 1, %s14
      %p191 = scmp.lt.s32.totalorder %s14, 3
      %p192 = pnand %p190, %p191
      %p193 = pneg %p192
      // Predicated region
      $region37: #{feed_forward.1} parent=5 // pred_check
        _
      $region38: #{feed_forward.1} parent=5 // pred_check_branch
        %195 = sbr.rel (%p192) target = $region40
      $region39: #{feed_forward.1} parent=5 // pred_region
        %s196 = ssub.s32 %s14, 1
        %s197 = smul.u32 2, %s19
        %p198 = scmp.lt.s32.totalorder %s197, 3
        %s199 = scalar_select %p198, %s197, 3
        %s200 = smul.addr %s199, 4
        %s201 = scalar_lea.vmem %s0, %s200
        %p202 = pneg %p40
        %p203 = pneg %p37
        %p204 = pneg %p61
        %p205 = pneg %p58
        %p206 = pneg %p82
        %p207 = pneg %p79
        %p208 = pneg %p103
        %p209 = pneg %p100
        %p210 = pneg %p124
        %p211 = pneg %p121
        %p212 = pneg %p150
        %p213 = pneg %p147
        %s214 = sand.u32 %s137, 1
        %s215 = scalar_lea.sflag [#allocation3], %s214
        %s216 = sand.u32 %s137, 1
        %s217 = smul.addr %s216, 16
        %s218 = scalar_lea.vmem [#allocation2], %s217
        %s219 = smul.u32 2, %s19
        %p220 = scmp.lt.s32.totalorder %s219, 3
        %s221 = scalar_select %p220, %s219, 3
        %s222 = smul.addr %s221, 4
        %s223 = scalar_lea.vmem %s0, %s222
        %s224 = smul.u32 2, %s19
        %s225 = smul.u32 2, %s19
        %v227 = vld [vmem:[%s223] sm:$0xf]
        %v228 = vld [vmem:[%s223 + $0x4] sm:$0xf]
        %v229 = vld [vmem:[%s1] sm:$0xff]
        %v230 = vld [vmem:[%s1 + $0x8] sm:$0xff]
        %v231 = vld [vmem:[%s1 + $0x10] sm:$0xff]
        %v232 = vld [vmem:[%s1 + $0x18] sm:$0xff]
        %v233 = vld [vmem:[%s1 + $0x20] sm:$0xff]
        %v234 = vld [vmem:[%s1 + $0x28] sm:$0xff]
        %v235 = vld [vmem:[%s1 + $0x30] sm:$0xff]
        %v236 = vld [vmem:[%s1 + $0x38] sm:$0xff]
        %v237 = vld [vmem:[%s1 + $0x40] sm:$0xff]
        %v238 = vld [vmem:[%s1 + $0x48] sm:$0xff]
        %v239 = vld [vmem:[%s1 + $0x50] sm:$0xff]
        %v240 = vld [vmem:[%s1 + $0x58] sm:$0xff]
        %v241 = vld [vmem:[%s1 + $0x60] sm:$0xff]
        %v242 = vld [vmem:[%s1 + $0x68] sm:$0xff]
        %v243 = vld [vmem:[%s1 + $0x70] sm:$0xff]
        %v244 = vld [vmem:[%s1 + $0x78] sm:$0xff]
        %v245 = vld [vmem:[%s1 + $0x80] sm:$0xff]
        %v246 = vld [vmem:[%s1 + $0x88] sm:$0xff]
        %v247 = vld [vmem:[%s1 + $0x90] sm:$0xff]
        %v248 = vld [vmem:[%s1 + $0x98] sm:$0xff]
        %v249 = vld [vmem:[%s1 + $0xa0] sm:$0xff]
        %v250 = vld [vmem:[%s1 + $0xa8] sm:$0xff]
        %v251 = vld [vmem:[%s1 + $0xb0] sm:$0xff]
        %v252 = vld [vmem:[%s1 + $0xb8] sm:$0xff]
        %v253 = vld [vmem:[%s1 + $0xc0] sm:$0xff]
        %v254 = vld [vmem:[%s1 + $0xc8] sm:$0xff]
        %v255 = vld [vmem:[%s1 + $0xd0] sm:$0xff]
        %v256 = vld [vmem:[%s1 + $0xd8] sm:$0xff]
        %v257 = vld [vmem:[%s1 + $0xe0] sm:$0xff]
        %v258 = vld [vmem:[%s1 + $0xe8] sm:$0xff]
        %v259 = vld [vmem:[%s1 + $0xf0] sm:$0xff]
        %v260 = vld [vmem:[%s1 + $0xf8] sm:$0xff]
        %v261 = vld [vmem:[%s2] sm:$0xf]
        %v263 = vlaneseq
        %v264 = vshrl.u32 %v263, 7
        %v265 = vsub.s32 0, %v264
        %v266 = vrot.slane %v261, %v265
        %v267 = vlaneseq
        %v268 = vshrl.u32 %v267, 7
        %v269 = vsub.s32 1, %v268
        %v270 = vrot.slane %v261, %v269
        %v271 = vlaneseq
        %v272 = vshrl.u32 %v271, 7
        %v273 = vsub.s32 2, %v272
        %v274 = vrot.slane %v261, %v273
        %v275 = vlaneseq
        %v276 = vshrl.u32 %v275, 7
        %v277 = vsub.s32 3, %v276
        %v278 = vrot.slane %v261, %v277
        %v285 = vunpack.c.l.b16 %v227
        %v286 = vunpack.c.l.b16 %v228
        %v287 = vpack.c.b16 %v286, %v285
        %v321 = vunpack.c.l.b16 %v229
        %v322 = vunpack.c.h.b16 %v229
        %v323 = vunpack.c.l.b16 %v230
        %v324 = vunpack.c.h.b16 %v230
        %v325 = vunpack.c.l.b16 %v231
        %v326 = vunpack.c.h.b16 %v231
        %v327 = vunpack.c.l.b16 %v232
        %v328 = vunpack.c.h.b16 %v232
        %v329 = vunpack.c.l.b16 %v233
        %v330 = vunpack.c.h.b16 %v233
        %v331 = vunpack.c.l.b16 %v234
        %v332 = vunpack.c.h.b16 %v234
        %v333 = vunpack.c.l.b16 %v235
        %v334 = vunpack.c.h.b16 %v235
        %v335 = vunpack.c.l.b16 %v236
        %v336 = vunpack.c.h.b16 %v236
        %v337 = vunpack.c.l.b16 %v237
        %v338 = vunpack.c.h.b16 %v237
        %v339 = vunpack.c.l.b16 %v238
        %v340 = vunpack.c.h.b16 %v238
        %v341 = vunpack.c.l.b16 %v239
        %v342 = vunpack.c.h.b16 %v239
        %v343 = vunpack.c.l.b16 %v240
        %v344 = vunpack.c.h.b16 %v240
        %v345 = vunpack.c.l.b16 %v241
        %v346 = vunpack.c.h.b16 %v241
        %v347 = vunpack.c.l.b16 %v242
        %v348 = vunpack.c.h.b16 %v242
        %v349 = vunpack.c.l.b16 %v243
        %v350 = vunpack.c.h.b16 %v243
        %v351 = vunpack.c.l.b16 %v244
        %v352 = vunpack.c.h.b16 %v244
        %v353 = vunpack.c.l.b16 %v245
        %v354 = vunpack.c.h.b16 %v245
        %v355 = vunpack.c.l.b16 %v246
        %v356 = vunpack.c.h.b16 %v246
        %v357 = vunpack.c.l.b16 %v247
        %v358 = vunpack.c.h.b16 %v247
        %v359 = vunpack.c.l.b16 %v248
        %v360 = vunpack.c.h.b16 %v248
        %v361 = vunpack.c.l.b16 %v249
        %v362 = vunpack.c.h.b16 %v249
        %v363 = vunpack.c.l.b16 %v250
        %v364 = vunpack.c.h.b16 %v250
        %v365 = vunpack.c.l.b16 %v251
        %v366 = vunpack.c.h.b16 %v251
        %v367 = vunpack.c.l.b16 %v252
        %v368 = vunpack.c.h.b16 %v252
        %v369 = vunpack.c.l.b16 %v253
        %v370 = vunpack.c.h.b16 %v253
        %v371 = vunpack.c.l.b16 %v254
        %v372 = vunpack.c.h.b16 %v254
        %v373 = vunpack.c.l.b16 %v255
        %v374 = vunpack.c.h.b16 %v255
        %v375 = vunpack.c.l.b16 %v256
        %v376 = vunpack.c.h.b16 %v256
        %v377 = vunpack.c.l.b16 %v257
        %v378 = vunpack.c.h.b16 %v257
        %v379 = vunpack.c.l.b16 %v258
        %v380 = vunpack.c.h.b16 %v258
        %v381 = vunpack.c.l.b16 %v259
        %v382 = vunpack.c.h.b16 %v259
        %v383 = vunpack.c.l.b16 %v260
        %v384 = vunpack.c.h.b16 %v260
        %v385 = vpack.c.b16 %v325, %v321
        %v386 = vpack.c.b16 %v326, %v322
        %v387 = vpack.c.b16 %v327, %v323
        %v388 = vpack.c.b16 %v328, %v324
        %v389 = vpack.c.b16 %v333, %v329
        %v390 = vpack.c.b16 %v334, %v330
        %v391 = vpack.c.b16 %v335, %v331
        %v392 = vpack.c.b16 %v336, %v332
        %v393 = vpack.c.b16 %v341, %v337
        %v394 = vpack.c.b16 %v342, %v338
        %v395 = vpack.c.b16 %v343, %v339
        %v396 = vpack.c.b16 %v344, %v340
        %v397 = vpack.c.b16 %v349, %v345
        %v398 = vpack.c.b16 %v350, %v346
        %v399 = vpack.c.b16 %v351, %v347
        %v400 = vpack.c.b16 %v352, %v348
        %v401 = vpack.c.b16 %v357, %v353
        %v402 = vpack.c.b16 %v358, %v354
        %v403 = vpack.c.b16 %v359, %v355
        %v404 = vpack.c.b16 %v360, %v356
        %v405 = vpack.c.b16 %v365, %v361
        %v406 = vpack.c.b16 %v366, %v362
        %v407 = vpack.c.b16 %v367, %v363
        %v408 = vpack.c.b16 %v368, %v364
        %v409 = vpack.c.b16 %v373, %v369
        %v410 = vpack.c.b16 %v374, %v370
        %v411 = vpack.c.b16 %v375, %v371
        %v412 = vpack.c.b16 %v376, %v372
        %v413 = vpack.c.b16 %v381, %v377
        %v414 = vpack.c.b16 %v382, %v378
        %v415 = vpack.c.b16 %v383, %v379
        %v416 = vpack.c.b16 %v384, %v380
        %449 = vmatprep.subr.bf16.mxu0 %v386
        %450 = vmatpush1.bf16.msra.mxu0 %v385
        %451 = vmatprep.subr.bf16.mxu0 %v390
        %452 = vmatpush1.bf16.msra.mxu0 %v389
        %453 = vmatprep.subr.bf16.mxu0 %v394
        %454 = vmatpush1.bf16.msra.mxu0 %v393
        %455 = vmatprep.subr.bf16.mxu0 %v398
        %456 = vmatpush1.bf16.msra.mxu0 %v397
        %457 = vmatprep.subr.bf16.mxu0 %v402
        %458 = vmatpush1.bf16.msra.mxu0 %v401
        %459 = vmatprep.subr.bf16.mxu0 %v406
        %460 = vmatpush1.bf16.msra.mxu0 %v405
        %461 = vmatprep.subr.bf16.mxu0 %v410
        %462 = vmatpush1.bf16.msra.mxu0 %v409
        %463 = vmatprep.subr.bf16.mxu0 %v414
        %464 = vmatpush1.bf16.msra.mxu0 %v413
        %465 = vmatprep.subr.bf16.mxu0 0
        %466 = vmatpush1.bf16.msra.mxu0 0
        %467 = vmatprep.subr.bf16.mxu0 0
        %468 = vmatpush1.bf16.msra.mxu0 0
        %469 = vmatprep.subr.bf16.mxu0 0
        %470 = vmatpush1.bf16.msra.mxu0 0
        %471 = vmatprep.subr.bf16.mxu0 0
        %472 = vmatpush1.bf16.msra.mxu0 0
        %473 = vmatprep.subr.bf16.mxu0 0
        %474 = vmatpush1.bf16.msra.mxu0 0
        %475 = vmatprep.subr.bf16.mxu0 0
        %476 = vmatpush1.bf16.msra.mxu0 0
        %477 = vmatprep.subr.bf16.mxu0 0
        %478 = vmatpush1.bf16.msra.mxu0 0
        %479 = vmatprep.subr.bf16.mxu0 0
        %480 = vmatpush1.bf16.msra.mxu0 0
        %481 = vmatprep.mubr.bf16.mxu0 0
        %482 = vmatmul.mubr.bf16.gmra.mrb[0].mxu0 %v287
        %v483 = vpop.f32.mrb[0].mxu0
        %v484 = vadd.f32 %v266, %v483
        %v485 = vpop.f32.mrb[0].mxu0
        %v486 = vadd.f32 %v270, %v485
        %v487 = vpop.f32.mrb[0].mxu0
        %v488 = vadd.f32 %v266, %v487
        %v489 = vpop.f32.mrb[0].mxu0
        %v490 = vadd.f32 %v270, %v489
        %491 = vdwg.mxu0
        %492 = vmatprep.subr.bf16.mxu0 %v388
        %493 = vmatpush1.bf16.msra.mxu0 %v387
        %494 = vmatprep.subr.bf16.mxu0 %v392
        %495 = vmatpush1.bf16.msra.mxu0 %v391
        %496 = vmatprep.subr.bf16.mxu0 %v396
        %497 = vmatpush1.bf16.msra.mxu0 %v395
        %498 = vmatprep.subr.bf16.mxu0 %v400
        %499 = vmatpush1.bf16.msra.mxu0 %v399
        %500 = vmatprep.subr.bf16.mxu0 %v404
        %501 = vmatpush1.bf16.msra.mxu0 %v403
        %502 = vmatprep.subr.bf16.mxu0 %v408
        %503 = vmatpush1.bf16.msra.mxu0 %v407
        %504 = vmatprep.subr.bf16.mxu0 %v412
        %505 = vmatpush1.bf16.msra.mxu0 %v411
        %506 = vmatprep.subr.bf16.mxu0 %v416
        %507 = vmatpush1.bf16.msra.mxu0 %v415
        %508 = vmatprep.subr.bf16.mxu0 0
        %509 = vmatpush1.bf16.msra.mxu0 0
        %510 = vmatprep.subr.bf16.mxu0 0
        %511 = vmatpush1.bf16.msra.mxu0 0
        %512 = vmatprep.subr.bf16.mxu0 0
        %513 = vmatpush1.bf16.msra.mxu0 0
        %514 = vmatprep.subr.bf16.mxu0 0
        %515 = vmatpush1.bf16.msra.mxu0 0
        %516 = vmatprep.subr.bf16.mxu0 0
        %517 = vmatpush1.bf16.msra.mxu0 0
        %518 = vmatprep.subr.bf16.mxu0 0
        %519 = vmatpush1.bf16.msra.mxu0 0
        %520 = vmatprep.subr.bf16.mxu0 0
        %521 = vmatpush1.bf16.msra.mxu0 0
        %522 = vmatprep.subr.bf16.mxu0 0
        %523 = vmatpush1.bf16.msra.mxu0 0
        %524 = vmatprep.mubr.bf16.mxu0 0
        %525 = vmatmul.mubr.bf16.gmra.mrb[0].mxu0 %v287
        %v526 = vpop.f32.mrb[0].mxu0
        %v527 = vadd.f32 %v274, %v526
        %v528 = vpop.f32.mrb[0].mxu0
        %v529 = vadd.f32 %v278, %v528
        %v530 = vpop.f32.mrb[0].mxu0
        %v531 = vadd.f32 %v274, %v530
        %v532 = vpop.f32.mrb[0].mxu0
        %v533 = vadd.f32 %v278, %v532
        %534 = vdwg.mxu0
        %v535 = vmul.f32 %v484, 0.5
        %v536 = vmul.f32 %v486, 0.5
        %v537 = vmul.f32 %v527, 0.5
        %v538 = vmul.f32 %v529, 0.5
        %v539 = vmul.f32 %v488, 0.5
        %v540 = vmul.f32 %v490, 0.5
        %v541 = vmul.f32 %v531, 0.5
        %v542 = vmul.f32 %v533, 0.5
        %v543 = vmul.f32 %v484, 0.70710677
        %v544 = vmul.f32 %v486, 0.70710677
        %v545 = vmul.f32 %v527, 0.70710677
        %v546 = vmul.f32 %v529, 0.70710677
        %v547 = vmul.f32 %v488, 0.70710677
        %v548 = vmul.f32 %v490, 0.70710677
        %v549 = vmul.f32 %v531, 0.70710677
        %v550 = vmul.f32 %v533, 0.70710677
        %v551 = verf.f32.pop %v543
        %v552 = verf.f32.pop %v544
        %v553 = verf.f32.pop %v545
        %v554 = verf.f32.pop %v546
        %v555 = verf.f32.pop %v547
        %v556 = verf.f32.pop %v548
        %v557 = verf.f32.pop %v549
        %v558 = verf.f32.pop %v550
        %v559 = vadd.f32 %v551, 1.0
        %v560 = vadd.f32 %v552, 1.0
        %v561 = vadd.f32 %v553, 1.0
        %v562 = vadd.f32 %v554, 1.0
        %v563 = vadd.f32 %v555, 1.0
        %v564 = vadd.f32 %v556, 1.0
        %v565 = vadd.f32 %v557, 1.0
        %v566 = vadd.f32 %v558, 1.0
        %v567 = vmul.f32 %v535, %v559
        %v568 = vmul.f32 %v536, %v560
        %v569 = vmul.f32 %v537, %v561
        %v570 = vmul.f32 %v538, %v562
        %v571 = vmul.f32 %v539, %v563
        %v572 = vmul.f32 %v540, %v564
        %v573 = vmul.f32 %v541, %v565
        %v574 = vmul.f32 %v542, %v566
        %v575 = vpack.c.bf16 %v571, %v567
        %v576 = vpack.c.bf16 %v572, %v568
        %v577 = vpack.c.bf16 %v573, %v569
        %v578 = vpack.c.bf16 %v574, %v570
        %v579 = vld [vmem:[%s3] sm:$0xf]
        %v580 = vld [vmem:[%s3 + $0x4] sm:$0xf]
        %v581 = vld [vmem:[%s3 + $0x8] sm:$0xf]
        %v582 = vld [vmem:[%s3 + $0xc] sm:$0xf]
        %v583 = vld [vmem:[%s3 + $0x10] sm:$0xf]
        %v584 = vld [vmem:[%s3 + $0x14] sm:$0xf]
        %v585 = vld [vmem:[%s3 + $0x18] sm:$0xf]
        %v586 = vld [vmem:[%s3 + $0x1c] sm:$0xf]
        %v587 = vld [vmem:[%s3 + $0x20] sm:$0xf]
        %v588 = vld [vmem:[%s3 + $0x24] sm:$0xf]
        %v589 = vld [vmem:[%s3 + $0x28] sm:$0xf]
        %v590 = vld [vmem:[%s3 + $0x2c] sm:$0xf]
        %v591 = vld [vmem:[%s3 + $0x30] sm:$0xf]
        %v592 = vld [vmem:[%s3 + $0x34] sm:$0xf]
        %v593 = vld [vmem:[%s3 + $0x38] sm:$0xf]
        %v594 = vld [vmem:[%s3 + $0x3c] sm:$0xf]
        %v595 = vld [vmem:[%s3 + $0x40] sm:$0xf]
        %v596 = vld [vmem:[%s3 + $0x44] sm:$0xf]
        %v597 = vld [vmem:[%s3 + $0x48] sm:$0xf]
        %v598 = vld [vmem:[%s3 + $0x4c] sm:$0xf]
        %v599 = vld [vmem:[%s3 + $0x50] sm:$0xf]
        %v600 = vld [vmem:[%s3 + $0x54] sm:$0xf]
        %v601 = vld [vmem:[%s3 + $0x58] sm:$0xf]
        %v602 = vld [vmem:[%s3 + $0x5c] sm:$0xf]
        %v603 = vld [vmem:[%s3 + $0x60] sm:$0xf]
        %v604 = vld [vmem:[%s3 + $0x64] sm:$0xf]
        %v605 = vld [vmem:[%s3 + $0x68] sm:$0xf]
        %v606 = vld [vmem:[%s3 + $0x6c] sm:$0xf]
        %v607 = vld [vmem:[%s3 + $0x70] sm:$0xf]
        %v608 = vld [vmem:[%s3 + $0x74] sm:$0xf]
        %v609 = vld [vmem:[%s3 + $0x78] sm:$0xf]
        %v610 = vld [vmem:[%s3 + $0x7c] sm:$0xf]
        %v611 = vld [vmem:[%s3 + $0x80] sm:$0xf]
        %v612 = vld [vmem:[%s3 + $0x84] sm:$0xf]
        %v613 = vld [vmem:[%s3 + $0x88] sm:$0xf]
        %v614 = vld [vmem:[%s3 + $0x8c] sm:$0xf]
        %v615 = vld [vmem:[%s3 + $0x90] sm:$0xf]
        %v616 = vld [vmem:[%s3 + $0x94] sm:$0xf]
        %v617 = vld [vmem:[%s3 + $0x98] sm:$0xf]
        %v618 = vld [vmem:[%s3 + $0x9c] sm:$0xf]
        %v619 = vld [vmem:[%s3 + $0xa0] sm:$0xf]
        %v620 = vld [vmem:[%s3 + $0xa4] sm:$0xf]
        %v621 = vld [vmem:[%s3 + $0xa8] sm:$0xf]
        %v622 = vld [vmem:[%s3 + $0xac] sm:$0xf]
        %v623 = vld [vmem:[%s3 + $0xb0] sm:$0xf]
        %v624 = vld [vmem:[%s3 + $0xb4] sm:$0xf]
        %v625 = vld [vmem:[%s3 + $0xb8] sm:$0xf]
        %v626 = vld [vmem:[%s3 + $0xbc] sm:$0xf]
        %v627 = vld [vmem:[%s3 + $0xc0] sm:$0xf]
        %v628 = vld [vmem:[%s3 + $0xc4] sm:$0xf]
        %v629 = vld [vmem:[%s3 + $0xc8] sm:$0xf]
        %v630 = vld [vmem:[%s3 + $0xcc] sm:$0xf]
        %v631 = vld [vmem:[%s3 + $0xd0] sm:$0xf]
        %v632 = vld [vmem:[%s3 + $0xd4] sm:$0xf]
        %v633 = vld [vmem:[%s3 + $0xd8] sm:$0xf]
        %v634 = vld [vmem:[%s3 + $0xdc] sm:$0xf]
        %v635 = vld [vmem:[%s3 + $0xe0] sm:$0xf]
        %v636 = vld [vmem:[%s3 + $0xe4] sm:$0xf]
        %v637 = vld [vmem:[%s3 + $0xe8] sm:$0xf]
        %v638 = vld [vmem:[%s3 + $0xec] sm:$0xf]
        %v639 = vld [vmem:[%s3 + $0xf0] sm:$0xf]
        %v640 = vld [vmem:[%s3 + $0xf4] sm:$0xf]
        %v641 = vld [vmem:[%s3 + $0xf8] sm:$0xf]
        %v642 = vld [vmem:[%s3 + $0xfc] sm:$0xf]
        %v643 = vld [vmem:[%s4] sm:$0x1]
        %v645 = vlaneseq
        %v646 = vshrl.u32 %v645, 7
        %v647 = vsub.s32 0, %v646
        %v648 = vrot.slane %v643, %v647
        %v714 = vunpack.c.l.b16 %v579
        %v715 = vunpack.c.l.b16 %v580
        %v716 = vunpack.c.l.b16 %v581
        %v717 = vunpack.c.l.b16 %v582
        %v718 = vunpack.c.l.b16 %v583
        %v719 = vunpack.c.l.b16 %v584
        %v720 = vunpack.c.l.b16 %v585
        %v721 = vunpack.c.l.b16 %v586
        %v722 = vunpack.c.l.b16 %v587
        %v723 = vunpack.c.l.b16 %v588
        %v724 = vunpack.c.l.b16 %v589
        %v725 = vunpack.c.l.b16 %v590
        %v726 = vunpack.c.l.b16 %v591
        %v727 = vunpack.c.l.b16 %v592
        %v728 = vunpack.c.l.b16 %v593
        %v729 = vunpack.c.l.b16 %v594
        %v730 = vunpack.c.l.b16 %v595
        %v731 = vunpack.c.l.b16 %v596
        %v732 = vunpack.c.l.b16 %v597
        %v733 = vunpack.c.l.b16 %v598
        %v734 = vunpack.c.l.b16 %v599
        %v735 = vunpack.c.l.b16 %v600
        %v736 = vunpack.c.l.b16 %v601
        %v737 = vunpack.c.l.b16 %v602
        %v738 = vunpack.c.l.b16 %v603
        %v739 = vunpack.c.l.b16 %v604
        %v740 = vunpack.c.l.b16 %v605
        %v741 = vunpack.c.l.b16 %v606
        %v742 = vunpack.c.l.b16 %v607
        %v743 = vunpack.c.l.b16 %v608
        %v744 = vunpack.c.l.b16 %v609
        %v745 = vunpack.c.l.b16 %v610
        %v746 = vunpack.c.l.b16 %v611
        %v747 = vunpack.c.l.b16 %v612
        %v748 = vunpack.c.l.b16 %v613
        %v749 = vunpack.c.l.b16 %v614
        %v750 = vunpack.c.l.b16 %v615
        %v751 = vunpack.c.l.b16 %v616
        %v752 = vunpack.c.l.b16 %v617
        %v753 = vunpack.c.l.b16 %v618
        %v754 = vunpack.c.l.b16 %v619
        %v755 = vunpack.c.l.b16 %v620
        %v756 = vunpack.c.l.b16 %v621
        %v757 = vunpack.c.l.b16 %v622
        %v758 = vunpack.c.l.b16 %v623
        %v759 = vunpack.c.l.b16 %v624
        %v760 = vunpack.c.l.b16 %v625
        %v761 = vunpack.c.l.b16 %v626
        %v762 = vunpack.c.l.b16 %v627
        %v763 = vunpack.c.l.b16 %v628
        %v764 = vunpack.c.l.b16 %v629
        %v765 = vunpack.c.l.b16 %v630
        %v766 = vunpack.c.l.b16 %v631
        %v767 = vunpack.c.l.b16 %v632
        %v768 = vunpack.c.l.b16 %v633
        %v769 = vunpack.c.l.b16 %v634
        %v770 = vunpack.c.l.b16 %v635
        %v771 = vunpack.c.l.b16 %v636
        %v772 = vunpack.c.l.b16 %v637
        %v773 = vunpack.c.l.b16 %v638
        %v774 = vunpack.c.l.b16 %v639
        %v775 = vunpack.c.l.b16 %v640
        %v776 = vunpack.c.l.b16 %v641
        %v777 = vunpack.c.l.b16 %v642
        %v778 = vpack.c.b16 %v715, %v714
        %v779 = vpack.c.b16 %v717, %v716
        %v780 = vpack.c.b16 %v719, %v718
        %v781 = vpack.c.b16 %v721, %v720
        %v782 = vpack.c.b16 %v723, %v722
        %v783 = vpack.c.b16 %v725, %v724
        %v784 = vpack.c.b16 %v727, %v726
        %v785 = vpack.c.b16 %v729, %v728
        %v786 = vpack.c.b16 %v731, %v730
        %v787 = vpack.c.b16 %v733, %v732
        %v788 = vpack.c.b16 %v735, %v734
        %v789 = vpack.c.b16 %v737, %v736
        %v790 = vpack.c.b16 %v739, %v738
        %v791 = vpack.c.b16 %v741, %v740
        %v792 = vpack.c.b16 %v743, %v742
        %v793 = vpack.c.b16 %v745, %v744
        %v794 = vpack.c.b16 %v747, %v746
        %v795 = vpack.c.b16 %v749, %v748
        %v796 = vpack.c.b16 %v751, %v750
        %v797 = vpack.c.b16 %v753, %v752
        %v798 = vpack.c.b16 %v755, %v754
        %v799 = vpack.c.b16 %v757, %v756
        %v800 = vpack.c.b16 %v759, %v758
        %v801 = vpack.c.b16 %v761, %v760
        %v802 = vpack.c.b16 %v763, %v762
        %v803 = vpack.c.b16 %v765, %v764
        %v804 = vpack.c.b16 %v767, %v766
        %v805 = vpack.c.b16 %v769, %v768
        %v806 = vpack.c.b16 %v771, %v770
        %v807 = vpack.c.b16 %v773, %v772
        %v808 = vpack.c.b16 %v775, %v774
        %v809 = vpack.c.b16 %v777, %v776
        %842 = vmatprep.subr.bf16.mxu0 0
        %843 = vmatpush1.bf16.msra.mxu0 %v778
        %844 = vmatprep.subr.bf16.mxu0 0
        %845 = vmatpush1.bf16.msra.mxu0 %v779
        %846 = vmatprep.subr.bf16.mxu0 0
        %847 = vmatpush1.bf16.msra.mxu0 %v780
        %848 = vmatprep.subr.bf16.mxu0 0
        %849 = vmatpush1.bf16.msra.mxu0 %v781
        %850 = vmatprep.subr.bf16.mxu0 0
        %851 = vmatpush1.bf16.msra.mxu0 %v782
        %852 = vmatprep.subr.bf16.mxu0 0
        %853 = vmatpush1.bf16.msra.mxu0 %v783
        %854 = vmatprep.subr.bf16.mxu0 0
        %855 = vmatpush1.bf16.msra.mxu0 %v784
        %856 = vmatprep.subr.bf16.mxu0 0
        %857 = vmatpush1.bf16.msra.mxu0 %v785
        %858 = vmatprep.subr.bf16.mxu0 0
        %859 = vmatpush1.bf16.msra.mxu0 %v786
        %860 = vmatprep.subr.bf16.mxu0 0
        %861 = vmatpush1.bf16.msra.mxu0 %v787
        %862 = vmatprep.subr.bf16.mxu0 0
        %863 = vmatpush1.bf16.msra.mxu0 %v788
        %864 = vmatprep.subr.bf16.mxu0 0
        %865 = vmatpush1.bf16.msra.mxu0 %v789
        %866 = vmatprep.subr.bf16.mxu0 0
        %867 = vmatpush1.bf16.msra.mxu0 %v790
        %868 = vmatprep.subr.bf16.mxu0 0
        %869 = vmatpush1.bf16.msra.mxu0 %v791
        %870 = vmatprep.subr.bf16.mxu0 0
        %871 = vmatpush1.bf16.msra.mxu0 %v792
        %872 = vmatprep.subr.bf16.mxu0 0
        %873 = vmatpush1.bf16.msra.mxu0 %v793
        %874 = vmatprep.mubr.bf16.mxu0 %v576
        %875 = vmatmul.mubr.bf16.gmra.mrb[0].mxu0 %v575
        %v876 = vpop.f32.mrb[0].mxu0
        %v877 = vadd.f32 %v648, %v876
        %v878 = vpop.f32.mrb[0].mxu0
        %v879 = vpop.f32.mrb[0].mxu0
        %v880 = vadd.f32 %v648, %v879
        %v881 = vpop.f32.mrb[0].mxu0
        %882 = vdwg.mxu0
        %883 = vmatprep.subr.bf16.mxu0 0
        %884 = vmatpush1.bf16.msra.mxu0 %v794
        %885 = vmatprep.subr.bf16.mxu0 0
        %886 = vmatpush1.bf16.msra.mxu0 %v795
        %887 = vmatprep.subr.bf16.mxu0 0
        %888 = vmatpush1.bf16.msra.mxu0 %v796
        %889 = vmatprep.subr.bf16.mxu0 0
        %890 = vmatpush1.bf16.msra.mxu0 %v797
        %891 = vmatprep.subr.bf16.mxu0 0
        %892 = vmatpush1.bf16.msra.mxu0 %v798
        %893 = vmatprep.subr.bf16.mxu0 0
        %894 = vmatpush1.bf16.msra.mxu0 %v799
        %895 = vmatprep.subr.bf16.mxu0 0
        %896 = vmatpush1.bf16.msra.mxu0 %v800
        %897 = vmatprep.subr.bf16.mxu0 0
        %898 = vmatpush1.bf16.msra.mxu0 %v801
        %899 = vmatprep.subr.bf16.mxu0 0
        %900 = vmatpush1.bf16.msra.mxu0 %v802
        %901 = vmatprep.subr.bf16.mxu0 0
        %902 = vmatpush1.bf16.msra.mxu0 %v803
        %903 = vmatprep.subr.bf16.mxu0 0
        %904 = vmatpush1.bf16.msra.mxu0 %v804
        %905 = vmatprep.subr.bf16.mxu0 0
        %906 = vmatpush1.bf16.msra.mxu0 %v805
        %907 = vmatprep.subr.bf16.mxu0 0
        %908 = vmatpush1.bf16.msra.mxu0 %v806
        %909 = vmatprep.subr.bf16.mxu0 0
        %910 = vmatpush1.bf16.msra.mxu0 %v807
        %911 = vmatprep.subr.bf16.mxu0 0
        %912 = vmatpush1.bf16.msra.mxu0 %v808
        %913 = vmatprep.subr.bf16.mxu0 0
        %914 = vmatpush1.bf16.msra.mxu0 %v809
        %915 = vmatprep.mubr.bf16.mxu0 %v578
        %916 = vmatmul.mubr.bf16.gmra.mrb[0].mxu0 %v577
        %v917 = vpop.f32.mrb[0].mxu0
        %v918 = vadd.f32 %v877, %v917
        %v919 = vpop.f32.mrb[0].mxu0
        %v920 = vpop.f32.mrb[0].mxu0
        %v921 = vadd.f32 %v880, %v920
        %v922 = vpop.f32.mrb[0].mxu0
        %923 = vdwg.mxu0
        %924 = vst [vmem:[%s218] sm:$0xff] %v918
        %925 = vst [vmem:[%s218 + $0x8] sm:$0xff] %v921
        %s926 = sand.u32 %s137, 1
        %s927 = scalar_lea.sflag [#allocation3], %s926
        %s928 = sand.u32 %s137, 1
        %s929 = smul.addr %s928, 16
        %s930 = scalar_lea.vmem [#allocation2], %s929
        // Predicated region
        $region41: #{feed_forward.1} parent=39 // pred_check
          %p931 = pneg %p147
        $region42: #{feed_forward.1} parent=39 // pred_check_branch
          %933 = sbr.rel (%p931) target = $region44
        $region43: #{feed_forward.1} parent=39 // pred_region
          %s934 = smul.u32 2, %s19
          %s936 = ssub.s32 256, 256
          %937 = vsyncadd %s927, %s936
          %s938 = smul.addr %s934, 128
          %s939 = scalar_lea.hbm %s5, %s938
          %s940 = sshll.u32 %s930, 4
          %s941 = int_to_ptr.vmem [resolvable:$true] %s940
          %946 = dma.vmem_to_hbm [thread:$0]  %s941, 256, %s939, %s927, 128, 128, 8
        $region44: #{feed_forward.1} parent=39 // pred_fallthru
          _
      $region40: #{feed_forward.1} parent=5 // pred_fallthru
        _
      %p947 = scmp.le.s32.totalorder 2, %s14
      // Predicated region
      $region45: #{feed_forward.1} parent=5 // pred_check
        %p948 = pneg %p947
      $region46: #{feed_forward.1} parent=5 // pred_check_branch
        %950 = sbr.rel (%p948) target = $region48
      $region47: #{feed_forward.1} parent=5 // pred_region
        %s951 = ssub.s32 %s14, 2
        // Predicated region
        $region49: #{feed_forward.1} parent=47 // pred_check
          %p952 = pneg %p153
        $region50: #{feed_forward.1} parent=47 // pred_check_branch
          %954 = sbr.rel (%p952) target = $region52
        $region51: #{feed_forward.1} parent=47 // pred_region
          %s955 = sand.u32 %s138, 1
          %s956 = scalar_lea.sflag [#allocation3], %s955
          %s957 = sand.u32 %s138, 1
          %s958 = smul.addr %s957, 16
          %s959 = scalar_lea.vmem [#allocation2], %s958
          %960 = dma.done %s956, 256
        $region52: #{feed_forward.1} parent=47 // pred_fallthru
          _
      $region48: #{feed_forward.1} parent=5 // pred_fallthru
        _
    $region6: #{feed_forward.1} parent=1 // loop_footer
      %s18 = sadd.s32 1, %s14
    $region7: #{feed_forward.1} parent=1 // loop_footer_branch
      %13 = sbr.rel target = $region3
    $region8: #{feed_forward.1} parent=1 // loop_exit
      _
    %961 = vsyncpa [#allocation3], 1
    %s962 = scalar_lea.sflag [#allocation3], 1
    %963 = vsyncpa %s962, 1

</llo_original>
